<compile_context>
chip_gen: v6e
topology: v6e:2x2x1
jax: 0.10.0
libtpu: 0.0.40
codegen_flags: <defaults>
</compile_context>

<pallas_src>
import functools

import jax
import jax.numpy as jnp
from jax.experimental import pallas as pl
from jax.experimental.pallas import tpu as pltpu


_MAX_ROW_TILE = 2048


def _device_kind():
    try:
        return jax.devices()[0].device_kind.lower()
    except Exception:
        return ""


def _tpu_vmem_capacity_bytes():
    """Per-TensorCore VMEM capacity, with conservative fallbacks."""
    kind = _device_kind()
    cap = None
    try:
        cap = int(getattr(pltpu.get_tpu_info(), "vmem_capacity_bytes", 0)) or None
    except Exception:
        cap = None
    if cap is None:
        # v5e / v5p / v6e expose 128 MiB per TensorCore; otherwise be conservative.
        cap = 128 * 1024 * 1024 if ("v5" in kind or "v6" in kind) else 64 * 1024 * 1024
    if "v7" in kind:
        # v7x has only 64 MiB per TensorCore; never budget above that.
        cap = min(cap, 64 * 1024 * 1024)
    return cap


def _default_num_chunks():
    """2 parallel row-chunks only where one kernel sees 2 TensorCores (megacore)."""
    kind = _device_kind()
    if not kind:
        return 1
    single_core = ("v5e", "v5 lite", "v5lite", "v6e", "v6 lite", "v6lite")
    if any(s in kind for s in single_core):
        return 1
    return 2


def _lm_crit_kernel(x_ref, tgt_ref, m_ref, num_out, den_out, num_acc, den_acc,
                    *, row_tile, tiles_per_chunk, rows_total, vocab):
    c = pl.program_id(0)          # parallel row-chunk axis (megacore split on v7x)
    t = pl.program_id(1)          # arbitrary (reduction) axis within the chunk

    @pl.when(t == 0)
    def _():
        num_acc[...] = jnp.zeros_like(num_acc)
        den_acc[...] = jnp.zeros_like(den_acc)

    x = x_ref[...]                # (row_tile, V) in the streamed dtype (bf16 ok)
    tgt = tgt_ref[...]            # (row_tile, 1) int32
    m = m_ref[...]                # (row_tile, 1) f32

    # gather(input, 1, target): one-hot select on the lane (vocab) axis, done in
    # the streamed dtype (exact: only zeros are added to the one selected value);
    # cast only the (row_tile, 1) gathered column to f32.
    col = jax.lax.broadcasted_iota(jnp.int32, (1, vocab), 1)
    masked = jnp.where(col == tgt, x, jnp.zeros_like(x))
    gathered = jnp.sum(masked, axis=1, keepdims=True).astype(jnp.float32)

    # Ragged-tail / duplicate-tile guard: rows at or past rows_total contribute 0
    # (the un-padded last input block and clamped duplicate tiles hold garbage,
    # possibly NaN/Inf -- a select, not a multiply, so nothing propagates).
    row0 = (c * tiles_per_chunk + t) * row_tile
    rows = row0 + jax.lax.broadcasted_iota(jnp.int32, (row_tile, 1), 0)
    valid = rows < rows_total
    gathered = jnp.where(valid, gathered, 0.0)
    m = jnp.where(valid, m, 0.0)

    # Per-row vector partials in VMEM (no serialized scalar RMW in the hot loop).
    num_acc[...] += gathered * m
    den_acc[...] += m

    @pl.when(t == pl.num_programs(1) - 1)
    def _():
        # One scalar reduce per chunk, written as a lane-dense output block.
        num_out[...] = jnp.zeros_like(num_out) + jnp.sum(num_acc[...])
        den_out[...] = jnp.zeros_like(den_out) + jnp.sum(den_acc[...])


def language_model_criterion(inp, target, mask, *, num_parallel_chunks=None,
                             max_row_tile=None):
    """inp: (B,T,V) float log-probs (f32 or bf16 -- pass bf16 straight in to halve
    HBM traffic), target: (B,T) int, mask: (B,T) float -> scalar f32 loss."""
    B, T, V = inp.shape
    R = B * T

    # target shift: cat(target[:,1:], target[:,0:1], dim=1)
    target_shifted = jnp.concatenate([target[:, 1:], target[:, :1]], axis=1)

    x2 = inp.reshape(R, V)                               # keep incoming dtype
    t2 = target_shifted.reshape(R, 1).astype(jnp.int32)
    m2 = mask.reshape(R, 1).astype(jnp.float32)

    # --- tile / grid selection ------------------------------------------------
    vmem_cap = _tpu_vmem_capacity_bytes()
    input_budget = min(vmem_cap * 3 // 8, 48 * 1024 * 1024)   # double-buffered stream
    vmem_limit = int(min(vmem_cap * 3 // 4, 100 * 1024 * 1024))

    itemsize = x2.dtype.itemsize
    # Per-row VMEM cost: double-buffered (rt, V) stream + lane-padded (rt, 1)
    # target/mask blocks (double-buffered) + (rt, 1) f32 scratch pair.
    per_row_bytes = 2 * V * itemsize + 3072
    rt = int(min(input_budget // per_row_bytes, _MAX_ROW_TILE))
    if max_row_tile is not None:
        rt = min(rt, int(max_row_tile))
    sub = {4: 8, 2: 16, 1: 32}.get(itemsize, 8)          # sublane granularity
    rt = max(sub, rt - rt % sub)
    rt = min(rt, -(-R // sub) * sub)                      # never bigger than padded R

    num_tiles = pl.cdiv(R, rt)
    if num_parallel_chunks is None:
        num_parallel_chunks = _default_num_chunks()
    nc = max(1, min(int(num_parallel_chunks), num_tiles))  # parallel row-chunks
    tpc = pl.cdiv(num_tiles, nc)                            # tiles per chunk

    def tile_map(c, t):
        # Clamp so duplicate tail tiles (when nc does not divide num_tiles) never
        # index out of bounds; their contribution is zeroed in-kernel.
        return (jnp.minimum(c * tpc + t, num_tiles - 1), 0)

    kernel = functools.partial(_lm_crit_kernel, row_tile=rt, tiles_per_chunk=tpc,
                               rows_total=R, vocab=V)

    num_parts, den_parts = pl.pallas_call(
        kernel,
        out_shape=(
            jax.ShapeDtypeStruct((nc, 8, 128), jnp.float32),
            jax.ShapeDtypeStruct((nc, 8, 128), jnp.float32),
        ),
        grid_spec=pltpu.PrefetchScalarGridSpec(
            num_scalar_prefetch=0,
            grid=(nc, tpc),
            in_specs=[
                pl.BlockSpec((rt, V), tile_map),   # streamed log-prob tiles (no padding)
                pl.BlockSpec((rt, 1), tile_map),   # per-tile shifted targets
                pl.BlockSpec((rt, 1), tile_map),   # per-tile mask
            ],
            out_specs=[
                pl.BlockSpec((1, 8, 128), lambda c, t: (c, 0, 0)),
                pl.BlockSpec((1, 8, 128), lambda c, t: (c, 0, 0)),
            ],
            scratch_shapes=[
                pltpu.VMEM((rt, 1), jnp.float32),   # per-row numerator partials
                pltpu.VMEM((rt, 1), jnp.float32),   # per-row mask partials
            ],
        ),
        compiler_params=pltpu.CompilerParams(
            dimension_semantics=("parallel", "arbitrary"),
            vmem_limit_bytes=vmem_limit,
        ),
    )(x2, t2, m2)

    num_total = jnp.sum(num_parts[:, 0, 0])
    den_total = jnp.sum(den_parts[:, 0, 0])
    return -(num_total / den_total)


def _reference(inp, target, mask):
    B, T, V = inp.shape
    tgt = jnp.concatenate([target[:, 1:], target[:, :1]], axis=1).reshape(-1)
    x = inp.reshape(-1, V).astype(jnp.float32)
    g = x[jnp.arange(B * T), tgt]
    m = mask.reshape(-1).astype(jnp.float32)
    return jnp.sum(-1.0 * g * m) / jnp.sum(m)


if __name__ == "__main__":
    def make_case(key, B, T, V, dtype):
        k1, k2, k3 = jax.random.split(key, 3)
        logits = jax.random.normal(k1, (B, T, V), dtype=jnp.float32)
        logprobs = jax.nn.log_softmax(logits, axis=-1).astype(dtype)
        target = jax.random.randint(k2, (B, T), 0, V, dtype=jnp.int32)
        mask = (jax.random.uniform(k3, (B, T)) > 0.3).astype(jnp.float32)
        mask = mask.at[0, 0].set(1.0)   # ensure nonzero mask sum
        return logprobs, target, mask

    key = jax.random.PRNGKey(0)
    k1, k2, k3 = jax.random.split(key, 3)

    # Case 1: module-scale smoke test (f32, single tile, auto chunk count).
    lp, tg, mk = make_case(k1, 2, 8, 32, jnp.float32)
    out = jax.block_until_ready(language_model_criterion(lp, tg, mk))
    ref = _reference(lp, tg, mk)
    assert jnp.allclose(out, ref, atol=1e-5, rtol=1e-5), (out, ref)

    # Case 2: multi-tile, ragged last tile, duplicate (clamped) tail tile
    # (odd tile count with 2 parallel chunks), V a multiple of 128.
    lp, tg, mk = make_case(k2, 3, 17, 384, jnp.float32)
    out = jax.block_until_ready(
        language_model_criterion(lp, tg, mk, num_parallel_chunks=2, max_row_tile=8))
    ref = _reference(lp, tg, mk)
    assert jnp.allclose(out, ref, atol=1e-5, rtol=1e-5), (out, ref)

    # Case 3: bf16 stream, V not a multiple of 128, ragged last tile, 2 chunks.
    lp, tg, mk = make_case(k3, 2, 13, 200, jnp.bfloat16)
    out = jax.block_until_ready(
        language_model_criterion(lp, tg, mk, num_parallel_chunks=2, max_row_tile=16))
    ref = _reference(lp, tg, mk)
    assert jnp.allclose(out, ref, atol=1e-4, rtol=1e-4), (out, ref)

    print("KERNEL_OK")
</pallas_src>

<mosaic_0001>
module attributes {stable_mosaic.version = 11 : i64} {
  func.func @_lm_crit_kernel(%arg0: i32, %arg1: i32, %arg2: memref<16x32xf32, #tpu.memory_space<vmem>>, %arg3: memref<16x1xi32, #tpu.memory_space<vmem>>, %arg4: memref<16x1xf32, #tpu.memory_space<vmem>>, %arg5: memref<1x8x128xf32, #tpu.memory_space<vmem>>, %arg6: memref<1x8x128xf32, #tpu.memory_space<vmem>>, %arg7: memref<16x1xf32, #tpu.memory_space<vmem>>, %arg8: memref<16x1xf32, #tpu.memory_space<vmem>>) attributes {dimension_semantics = [#tpu.dimension_semantics<parallel>, #tpu.dimension_semantics<arbitrary>], iteration_bounds = array<i64: 1, 1>, scalar_prefetch = 0 : i64, scratch_operands = 2 : i64, tpu.core_type = #tpu.core_type<tc>, window_params = [{transform_indices = @transform_0, window_bounds = array<i64: 16, 32>}, {transform_indices = @transform_1, window_bounds = array<i64: 16, 1>}, {transform_indices = @transform_2, window_bounds = array<i64: 16, 1>}, {transform_indices = @transform_3, window_bounds = array<i64: 1, 8, 128>}, {transform_indices = @transform_4, window_bounds = array<i64: 1, 8, 128>}]} {
    %c0_i32 = arith.constant 0 : i32
    %0 = arith.cmpi eq, %arg1, %c0_i32 : i32
    %1 = arith.extui %0 : i1 to i32
    %c0_i32_0 = arith.constant 0 : i32
    %2 = arith.cmpi ne, %1, %c0_i32_0 : i32
    scf.if %2 {
      %cst_20 = arith.constant 0.000000e+00 : f32
      %36 = vector.broadcast %cst_20 : f32 to vector<16x1xf32>
      %c0_21 = arith.constant 0 : index
      %c0_22 = arith.constant 0 : index
      %37 = vector.load %arg7[%c0_21, %c0_22] : memref<16x1xf32, #tpu.memory_space<vmem>>, vector<16x1xf32>
      tpu.vector_store %arg7[%c0_21, %c0_22], %36 {strides = array<i32>} : memref<16x1xf32, #tpu.memory_space<vmem>>, vector<16x1xf32>,
      %cst_23 = arith.constant 0.000000e+00 : f32
      %38 = vector.broadcast %cst_23 : f32 to vector<16x1xf32>
      %c0_24 = arith.constant 0 : index
      %c0_25 = arith.constant 0 : index
      %39 = vector.load %arg8[%c0_24, %c0_25] : memref<16x1xf32, #tpu.memory_space<vmem>>, vector<16x1xf32>
      tpu.vector_store %arg8[%c0_24, %c0_25], %38 {strides = array<i32>} : memref<16x1xf32, #tpu.memory_space<vmem>>, vector<16x1xf32>,
    } else {
    }
    %c0 = arith.constant 0 : index
    %c0_1 = arith.constant 0 : index
    %3 = vector.load %arg2[%c0, %c0_1] : memref<16x32xf32, #tpu.memory_space<vmem>>, vector<16x32xf32>
    %c0_2 = arith.constant 0 : index
    %c0_3 = arith.constant 0 : index
    %4 = vector.load %arg3[%c0_2, %c0_3] : memref<16x1xi32, #tpu.memory_space<vmem>>, vector<16x1xi32>
    %c0_4 = arith.constant 0 : index
    %c0_5 = arith.constant 0 : index
    %5 = vector.load %arg4[%c0_4, %c0_5] : memref<16x1xf32, #tpu.memory_space<vmem>>, vector<16x1xf32>
    %6 = tpu.iota {dimensions = array<i32: 1>} : vector<1x32xi32>
    %7 = vector.broadcast %6 : vector<1x32xi32> to vector<16x32xi32>
    %8 = vector.broadcast %4 : vector<16x1xi32> to vector<16x32xi32>
    %9 = arith.cmpi eq, %7, %8 : vector<16x32xi32>
    %cst = arith.constant 0.000000e+00 : f32
    %10 = vector.broadcast %cst : f32 to vector<16x32xf32>
    %11 = arith.select %9, %3, %10 : vector<16x32xi1>, vector<16x32xf32>
    %cst_6 = arith.constant dense<0.000000e+00> : vector<16xf32>
    %12 = vector.multi_reduction <add>, %11, %cst_6 [1] : vector<16x32xf32> to vector<16xf32>
    %13 = vector.shape_cast %12 : vector<16xf32> to vector<16x1xf32>
    %c1_i32 = arith.constant 1 : i32
    %14 = arith.muli %arg0, %c1_i32 : i32
    %15 = arith.addi %14, %arg1 : i32
    %c16_i32 = arith.constant 16 : i32
    %16 = arith.muli %15, %c16_i32 : i32
    %17 = tpu.iota {dimensions = array<i32: 0>} : vector<16x1xi32>
    %18 = vector.broadcast %16 : i32 to vector<16x1xi32>
    %19 = arith.addi %18, %17 : vector<16x1xi32>
    %c16_i32_7 = arith.constant 16 : i32
    %20 = vector.broadcast %c16_i32_7 : i32 to vector<16x1xi32>
    %21 = arith.cmpi slt, %19, %20 : vector<16x1xi32>
    %cst_8 = arith.constant 0.000000e+00 : f32
    %22 = vector.broadcast %cst_8 : f32 to vector<16x1xf32>
    %23 = arith.select %21, %13, %22 : vector<16x1xi1>, vector<16x1xf32>
    %cst_9 = arith.constant 0.000000e+00 : f32
    %24 = vector.broadcast %cst_9 : f32 to vector<16x1xf32>
    %25 = arith.select %21, %5, %24 : vector<16x1xi1>, vector<16x1xf32>
    %c0_10 = arith.constant 0 : index
    %c0_11 = arith.constant 0 : index
    %26 = vector.load %arg7[%c0_10, %c0_11] : memref<16x1xf32, #tpu.memory_space<vmem>>, vector<16x1xf32>
    %27 = arith.mulf %23, %25 : vector<16x1xf32>
    %28 = arith.addf %26, %27 : vector<16x1xf32>
    %c0_12 = arith.constant 0 : index
    %c0_13 = arith.constant 0 : index
    %29 = vector.load %arg7[%c0_12, %c0_13] : memref<16x1xf32, #tpu.memory_space<vmem>>, vector<16x1xf32>
    tpu.vector_store %arg7[%c0_12, %c0_13], %28 {strides = array<i32>} : memref<16x1xf32, #tpu.memory_space<vmem>>, vector<16x1xf32>,
    %c0_14 = arith.constant 0 : index
    %c0_15 = arith.constant 0 : index
    %30 = vector.load %arg8[%c0_14, %c0_15] : memref<16x1xf32, #tpu.memory_space<vmem>>, vector<16x1xf32>
    %31 = arith.addf %30, %25 : vector<16x1xf32>
    %c0_16 = arith.constant 0 : index
    %c0_17 = arith.constant 0 : index
    %32 = vector.load %arg8[%c0_16, %c0_17] : memref<16x1xf32, #tpu.memory_space<vmem>>, vector<16x1xf32>
    tpu.vector_store %arg8[%c0_16, %c0_17], %31 {strides = array<i32>} : memref<16x1xf32, #tpu.memory_space<vmem>>, vector<16x1xf32>,
    %c0_i32_18 = arith.constant 0 : i32
    %33 = arith.cmpi eq, %arg1, %c0_i32_18 : i32
    %34 = arith.extui %33 : i1 to i32
    %c0_i32_19 = arith.constant 0 : i32
    %35 = arith.cmpi ne, %34, %c0_i32_19 : i32
    scf.if %35 {
      %cst_20 = arith.constant 0.000000e+00 : f32
      %36 = vector.broadcast %cst_20 : f32 to vector<1x8x128xf32>
      %c0_21 = arith.constant 0 : index
      %c0_22 = arith.constant 0 : index
      %37 = vector.load %arg7[%c0_21, %c0_22] : memref<16x1xf32, #tpu.memory_space<vmem>>, vector<16x1xf32>
      %38 = vector.shape_cast %37 : vector<16x1xf32> to vector<1x16x1xf32>
      %cst_23 = arith.constant dense<0.000000e+00> : vector<1xf32>
      %39 = vector.multi_reduction <add>, %38, %cst_23 [1, 2] : vector<1x16x1xf32> to vector<1xf32>
      %40 = vector.shape_cast %39 : vector<1xf32> to vector<1x1x1xf32>
      %41 = vector.extract %40[0, 0, 0] : f32 from vector<1x1x1xf32>
      %42 = vector.broadcast %41 : f32 to vector<1x8x128xf32>
      %43 = arith.addf %36, %42 : vector<1x8x128xf32>
      %c0_24 = arith.constant 0 : index
      %c0_25 = arith.constant 0 : index
      %c0_26 = arith.constant 0 : index
      %44 = vector.load %arg5[%c0_24, %c0_25, %c0_26] : memref<1x8x128xf32, #tpu.memory_space<vmem>>, vector<1x8x128xf32>
      tpu.vector_store %arg5[%c0_24, %c0_25, %c0_26], %43 {strides = array<i32>} : memref<1x8x128xf32, #tpu.memory_space<vmem>>, vector<1x8x128xf32>,
      %cst_27 = arith.constant 0.000000e+00 : f32
      %45 = vector.broadcast %cst_27 : f32 to vector<1x8x128xf32>
      %c0_28 = arith.constant 0 : index
      %c0_29 = arith.constant 0 : index
      %46 = vector.load %arg8[%c0_28, %c0_29] : memref<16x1xf32, #tpu.memory_space<vmem>>, vector<16x1xf32>
      %47 = vector.shape_cast %46 : vector<16x1xf32> to vector<1x16x1xf32>
      %cst_30 = arith.constant dense<0.000000e+00> : vector<1xf32>
      %48 = vector.multi_reduction <add>, %47, %cst_30 [1, 2] : vector<1x16x1xf32> to vector<1xf32>
      %49 = vector.shape_cast %48 : vector<1xf32> to vector<1x1x1xf32>
      %50 = vector.extract %49[0, 0, 0] : f32 from vector<1x1x1xf32>
      %51 = vector.broadcast %50 : f32 to vector<1x8x128xf32>
      %52 = arith.addf %45, %51 : vector<1x8x128xf32>
      %c0_31 = arith.constant 0 : index
      %c0_32 = arith.constant 0 : index
      %c0_33 = arith.constant 0 : index
      %53 = vector.load %arg6[%c0_31, %c0_32, %c0_33] : memref<1x8x128xf32, #tpu.memory_space<vmem>>, vector<1x8x128xf32>
      tpu.vector_store %arg6[%c0_31, %c0_32, %c0_33], %52 {strides = array<i32>} : memref<1x8x128xf32, #tpu.memory_space<vmem>>, vector<1x8x128xf32>,
    } else {
    }
    return
  }
  func.func @transform_0(%arg0: i32, %arg1: i32) -> (i32, i32) {
    %c1_i32 = arith.constant 1 : i32
    %0 = arith.muli %arg0, %c1_i32 : i32
    %1 = arith.addi %0, %arg1 : i32
    %c0_i32 = arith.constant 0 : i32
    %2 = arith.minsi %1, %c0_i32 : i32
    %c0_i32_0 = arith.constant 0 : i32
    %c0_i32_1 = arith.constant 0 : i32
    return %2, %c0_i32_0 : i32, i32
  }
  func.func @transform_1(%arg0: i32, %arg1: i32) -> (i32, i32) {
    %c1_i32 = arith.constant 1 : i32
    %0 = arith.muli %arg0, %c1_i32 : i32
    %1 = arith.addi %0, %arg1 : i32
    %c0_i32 = arith.constant 0 : i32
    %2 = arith.minsi %1, %c0_i32 : i32
    %c0_i32_0 = arith.constant 0 : i32
    %c0_i32_1 = arith.constant 0 : i32
    return %2, %c0_i32_0 : i32, i32
  }
  func.func @transform_2(%arg0: i32, %arg1: i32) -> (i32, i32) {
    %c1_i32 = arith.constant 1 : i32
    %0 = arith.muli %arg0, %c1_i32 : i32
    %1 = arith.addi %0, %arg1 : i32
    %c0_i32 = arith.constant 0 : i32
    %2 = arith.minsi %1, %c0_i32 : i32
    %c0_i32_0 = arith.constant 0 : i32
    %c0_i32_1 = arith.constant 0 : i32
    return %2, %c0_i32_0 : i32, i32
  }
  func.func @transform_3(%arg0: i32, %arg1: i32) -> (i32, i32, i32) {
    %c0_i32 = arith.constant 0 : i32
    %c0_i32_0 = arith.constant 0 : i32
    %c0_i32_1 = arith.constant 0 : i32
    return %arg0, %c0_i32, %c0_i32_0 : i32, i32, i32
  }
  func.func @transform_4(%arg0: i32, %arg1: i32) -> (i32, i32, i32) {
    %c0_i32 = arith.constant 0 : i32
    %c0_i32_0 = arith.constant 0 : i32
    %c0_i32_1 = arith.constant 0 : i32
    return %arg0, %c0_i32, %c0_i32_0 : i32, i32, i32
  }
}

</mosaic_0001>

<llo_original>
// kernel: tpu_custom_call.1
$region0: #{tpu_custom_call.1}
  #allocation0 [shape = 'u32[]', space=smem, size = 0x4, offset = 0x4, fixed_abs, tag = 'smem constant byte address 0x4 - core index']
  #allocation1 [shape = 'u32[144,128]{1,0:T(1,128)}', space=vmem, size = 0x12000, scoped, tag = 'internal scratch']
  #allocation2 [shape = 'f32[16,1]{1,0:T(8,128)}', space=vmem, size = 0x2000, scoped, tag = 'scratch operand']
  #allocation3 [shape = 'f32[16,1]{1,0:T(8,128)}', space=vmem, size = 0x2000, scoped, tag = 'scratch operand']
  %s0 = inlined_call_operand.vmem [shape: f32[16,32], index: 0, kind: input, shape index: {}]
  %s1 = inlined_call_operand.vmem [shape: s32[16,1], index: 1, kind: input, shape index: {}]
  %s2 = inlined_call_operand.vmem [shape: f32[16,1], index: 2, kind: input, shape index: {}]
  %s3 = inlined_call_operand.hbm [shape: f32[1,8,128], index: 3, kind: output, shape index: {0}]
  %s4 = inlined_call_operand.hbm [shape: f32[1,8,128], index: 4, kind: output, shape index: {1}]
  %5 = xla_tuple %s3, %s4
  %s6 = sld [smem:[#allocation0]]
  $region38: #{tpu_custom_call.1} parent=0
    _
  %s8 = ssub.s32 1, %s6
  %s9 = scalar_select 0, %s8, %s6
  $region1: #{tpu_custom_call.1} parent=0
    #allocation4 [shape = 'u8[4096]{0}', space=vmem, size = 0x1000, scoped, tag = 'output window, operand 0, single buffered']
    #allocation5 [shape = 's32[1]{0}', space=sflag, size = 0x4, scoped, tag = 'scoped memory for tpu_custom_call.1']
    #allocation6 [shape = 'u8[4096]{0}', space=vmem, size = 0x1000, scoped, tag = 'output window, operand 1, single buffered']
    #allocation7 [shape = 's32[1]{0}', space=sflag, size = 0x4, scoped, tag = 'scoped memory for tpu_custom_call.1']
    %10 = vsyncpa [#allocation5], 0
    %11 = vsyncpa [#allocation7], 0
    // Predicated region
    $region2: #{tpu_custom_call.1} parent=1 // pred_check
      _
    $region3: #{tpu_custom_call.1} parent=1 // pred_check_branch
      %13 = sbr.rel (0) target = $region5
    $region4: #{tpu_custom_call.1} parent=1 // pred_region
      %s14 = sadd.s32 0, 0
      %p15 = scmp.lt.s32.totalorder %s14, 0
      %s16 = scalar_select %p15, %s14, 0
      %s17 = smul.u32 2, %s16
      %p18 = scmp.lt.s32.totalorder %s17, 1
      %s19 = scalar_select %p18, %s17, 1
      %s20 = smul.addr %s19, 8
      %s21 = scalar_lea.vmem %s0, %s20
      %s22 = sadd.s32 0, 0
      %p23 = scmp.lt.s32.totalorder %s22, 0
      %s24 = scalar_select %p23, %s22, 0
      %s25 = smul.u32 2, %s24
    $region5: #{tpu_custom_call.1} parent=1 // pred_fallthru
      _
    // Predicated region
    $region6: #{tpu_custom_call.1} parent=1 // pred_check
      _
    $region7: #{tpu_custom_call.1} parent=1 // pred_check_branch
      %27 = sbr.rel (0) target = $region9
    $region8: #{tpu_custom_call.1} parent=1 // pred_region
      %s28 = sadd.s32 0, 0
      %p29 = scmp.lt.s32.totalorder %s28, 0
      %s30 = scalar_select %p29, %s28, 0
      %s31 = smul.u32 2, %s30
      %p32 = scmp.lt.s32.totalorder %s31, 1
      %s33 = scalar_select %p32, %s31, 1
      %s34 = smul.addr %s33, 8
      %s35 = scalar_lea.vmem %s1, %s34
      %s36 = sadd.s32 0, 0
      %p37 = scmp.lt.s32.totalorder %s36, 0
      %s38 = scalar_select %p37, %s36, 0
      %s39 = smul.u32 2, %s38
    $region9: #{tpu_custom_call.1} parent=1 // pred_fallthru
      _
    // Predicated region
    $region10: #{tpu_custom_call.1} parent=1 // pred_check
      _
    $region11: #{tpu_custom_call.1} parent=1 // pred_check_branch
      %41 = sbr.rel (0) target = $region13
    $region12: #{tpu_custom_call.1} parent=1 // pred_region
      %s42 = sadd.s32 0, 0
      %p43 = scmp.lt.s32.totalorder %s42, 0
      %s44 = scalar_select %p43, %s42, 0
      %s45 = smul.u32 2, %s44
      %p46 = scmp.lt.s32.totalorder %s45, 1
      %s47 = scalar_select %p46, %s45, 1
      %s48 = smul.addr %s47, 8
      %s49 = scalar_lea.vmem %s2, %s48
      %s50 = sadd.s32 0, 0
      %p51 = scmp.lt.s32.totalorder %s50, 0
      %s52 = scalar_select %p51, %s50, 0
      %s53 = smul.u32 2, %s52
    $region13: #{tpu_custom_call.1} parent=1 // pred_fallthru
      _
    %s54 = sadd.s32 0, 0
    %p55 = scmp.lt.s32.totalorder %s54, 0
    %s56 = scalar_select %p55, %s54, 0
    %s57 = smul.u32 2, %s56
    %p58 = scmp.lt.s32.totalorder %s57, 1
    %s59 = scalar_select %p58, %s57, 1
    %s60 = smul.addr %s59, 8
    %s61 = scalar_lea.vmem %s0, %s60
    %s62 = sadd.s32 0, 0
    %p63 = scmp.lt.s32.totalorder %s62, 0
    %s64 = scalar_select %p63, %s62, 0
    %s65 = smul.u32 2, %s64
    %p66 = scmp.lt.s32.totalorder %s65, 1
    %s67 = scalar_select %p66, %s65, 1
    %s68 = smul.addr %s67, 8
    %s69 = scalar_lea.vmem %s1, %s68
    %s70 = sadd.s32 0, 0
    %p71 = scmp.lt.s32.totalorder %s70, 0
    %s72 = scalar_select %p71, %s70, 0
    %s73 = smul.u32 2, %s72
    %p74 = scmp.lt.s32.totalorder %s73, 1
    %s75 = scalar_select %p74, %s73, 1
    %s76 = smul.addr %s75, 8
    %s77 = scalar_lea.vmem %s2, %s76
    %s78 = sadd.s32 0, 0
    %p79 = scmp.lt.s32.totalorder %s78, 0
    %s80 = scalar_select %p79, %s78, 0
    %s81 = smul.u32 2, %s80
    %p82 = scmp.lt.s32.totalorder %s81, 1
    %s83 = scalar_select %p82, %s81, 1
    %s84 = smul.addr %s83, 8
    %s85 = scalar_lea.vmem %s0, %s84
    %s86 = sadd.s32 0, 0
    %p87 = scmp.lt.s32.totalorder %s86, 0
    %s88 = scalar_select %p87, %s86, 0
    %s89 = smul.u32 2, %s88
    %s90 = sadd.s32 0, 0
    %p91 = scmp.lt.s32.totalorder %s90, 0
    %s92 = scalar_select %p91, %s90, 0
    %s93 = smul.u32 2, %s92
    %p94 = scmp.lt.s32.totalorder %s93, 1
    %s95 = scalar_select %p94, %s93, 1
    %s96 = smul.addr %s95, 8
    %s97 = scalar_lea.vmem %s1, %s96
    %s98 = sadd.s32 0, 0
    %p99 = scmp.lt.s32.totalorder %s98, 0
    %s100 = scalar_select %p99, %s98, 0
    %s101 = smul.u32 2, %s100
    %s102 = sadd.s32 0, 0
    %p103 = scmp.lt.s32.totalorder %s102, 0
    %s104 = scalar_select %p103, %s102, 0
    %s105 = smul.u32 2, %s104
    %p106 = scmp.lt.s32.totalorder %s105, 1
    %s107 = scalar_select %p106, %s105, 1
    %s108 = smul.addr %s107, 8
    %s109 = scalar_lea.vmem %s2, %s108
    %s110 = sadd.s32 0, 0
    %p111 = scmp.lt.s32.totalorder %s110, 0
    %s112 = scalar_select %p111, %s110, 0
    %s113 = smul.u32 2, %s112
    %p114 = scmp.eq.s32.totalorder 0, 0
    // Predicated region
    $region14: #{tpu_custom_call.1} parent=1 // pred_check
      %p115 = pneg %p114
    $region15: #{tpu_custom_call.1} parent=1 // pred_check_branch
      %117 = sbr.rel (%p115) target = $region17
    $region16: #{tpu_custom_call.1} parent=1 // pred_region
      %vm118 = vcmask 7168
      %119 = vst.msk [vmem:[#allocation2] sm:$0xff] %vm118, 0.0
      %120 = vst.msk [vmem:[#allocation2 + $0x8] sm:$0xff] %vm118, 0.0
      %121 = vst.msk [vmem:[#allocation3] sm:$0xff] %vm118, 0.0
      %122 = vst.msk [vmem:[#allocation3 + $0x8] sm:$0xff] %vm118, 0.0
    $region17: #{tpu_custom_call.1} parent=1 // pred_fallthru
      _
    %v123 = vld [vmem:[%s85] sm:$0xff]
    %v124 = vld [vmem:[%s85 + $0x8] sm:$0xff]
    %v125 = vld [vmem:[%s97] sm:$0xff]
    %v126 = vld [vmem:[%s97 + $0x8] sm:$0xff]
    %v127 = vld [vmem:[%s109] sm:$0xff]
    %v128 = vld [vmem:[%s109 + $0x8] sm:$0xff]
    %v129 = vlaneseq
    %v130 = vand.u32 %v129, 127
    %131 = vset.pattern.permute.xlu0 0
    %132 = vperm.xlu0 %131, %v125
    %v133 = vpop.permute.xlu0 %132
    %134 = vset.pattern.permute.xlu0 0
    %135 = vperm.xlu0 %134, %v126
    %v136 = vpop.permute.xlu0 %135
    %vm137 = vcmp.eq.s32.totalorder %v130, %v133
    %vm138 = vcmp.eq.s32.totalorder %v130, %v136
    %v139 = vsel %vm137, %v123, 0.0
    %v140 = vsel %vm138, %v124, 0.0
    %vm141 = vcmask 261120
    %v142 = vsel %vm141, %v139, 0.0
    %143 = vadd.xlane.f32.xlu0 %v142
    %v144 = vpop.xlane.xlu0 %143
    %v145 = vsel %vm141, %v140, 0.0
    %146 = vadd.xlane.f32.xlu0 %v145
    %v147 = vpop.xlane.xlu0 %146
    %s148 = sadd.s32 0, 0
    %s149 = smul.u32 %s148, 16
    %v150 = vlaneseq
    %v151 = vshrl.u32 %v150, 7
    %v152 = vadd.s32 %v151, 8
    %v153 = vstv %s149
    %v154 = vadd.s32 %v153, %v151
    %v155 = vadd.s32 %v153, %v152
    %vm156 = vcmp.lt.s32.totalorder %v154, 16
    %vm157 = vcmp.lt.s32.totalorder %v155, 16
    %v158 = vsel %vm156, %v144, 0.0
    %v159 = vsel %vm157, %v147, 0.0
    %v160 = vsel %vm156, %v127, 0.0
    %v161 = vsel %vm157, %v128, 0.0
    %v162 = vld [vmem:[#allocation2] sm:$0xff]
    %v163 = vld [vmem:[#allocation2 + $0x8] sm:$0xff]
    %v164 = vmul.f32 %v158, %v160
    %v165 = vmul.f32 %v159, %v161
    %v166 = vadd.f32 %v162, %v164
    %v167 = vadd.f32 %v163, %v165
    %vm168 = vcmask 7168
    %169 = vst.msk [vmem:[#allocation2] sm:$0xff] %vm168, %v166
    %170 = vst.msk [vmem:[#allocation2 + $0x8] sm:$0xff] %vm168, %v167
    %v171 = vld [vmem:[#allocation3] sm:$0xff]
    %v172 = vld [vmem:[#allocation3 + $0x8] sm:$0xff]
    %v173 = vadd.f32 %v171, %v160
    %v174 = vadd.f32 %v172, %v161
    %175 = vst.msk [vmem:[#allocation3] sm:$0xff] %vm168, %v173
    %176 = vst.msk [vmem:[#allocation3 + $0x8] sm:$0xff] %vm168, %v174
    // Predicated region
    $region18: #{tpu_custom_call.1} parent=1 // pred_check
      %p177 = pneg %p114
    $region19: #{tpu_custom_call.1} parent=1 // pred_check_branch
      %179 = sbr.rel (%p177) target = $region21
    $region20: #{tpu_custom_call.1} parent=1 // pred_region
      %v180 = vld [vmem:[#allocation2] sm:$0xff]
      %v181 = vld [vmem:[#allocation2 + $0x8] sm:$0xff]
      %v182 = vsel %vm168, %v180, 0.0
      %v183 = vsel %vm168, %v181, 0.0
      %v184 = vadd.f32 %v182, %v183
      %185 = vadd.xlane.f32.xlu0 %v184
      %v186 = vpop.xlane.xlu0 %185
      %v187 = vrot.slane %v186, 4
      %v188 = vadd.f32 %v186, %v187
      %v189 = vrot.slane %v188, 2
      %v190 = vadd.f32 %v188, %v189
      %v191 = vrot.slane %v190, 1
      %v192 = vadd.f32 %v190, %v191
      %s193 = vtos %v192
      %v194 = vstv %s193
      %v195 = vadd.f32 %v194, 0.0
      %196 = vst [vmem:[#allocation4] sm:$0xff] %v195
      %v197 = vld [vmem:[#allocation3] sm:$0xff]
      %v198 = vld [vmem:[#allocation3 + $0x8] sm:$0xff]
      %v199 = vsel %vm168, %v197, 0.0
      %v200 = vsel %vm168, %v198, 0.0
      %v201 = vadd.f32 %v199, %v200
      %202 = vadd.xlane.f32.xlu0 %v201
      %v203 = vpop.xlane.xlu0 %202
      %v204 = vrot.slane %v203, 4
      %v205 = vadd.f32 %v203, %v204
      %v206 = vrot.slane %v205, 2
      %v207 = vadd.f32 %v205, %v206
      %v208 = vrot.slane %v207, 1
      %v209 = vadd.f32 %v207, %v208
      %s210 = vtos %v209
      %v211 = vstv %s210
      %v212 = vadd.f32 %v211, 0.0
      %213 = vst [vmem:[#allocation6] sm:$0xff] %v212
    $region21: #{tpu_custom_call.1} parent=1 // pred_fallthru
      _
    // Predicated region
    $region22: #{tpu_custom_call.1} parent=1 // pred_check
      _
    $region23: #{tpu_custom_call.1} parent=1 // pred_check_branch
      %215 = sbr.rel (0) target = $region25
    $region24: #{tpu_custom_call.1} parent=1 // pred_region
      %s217 = ssub.s32 128, 128
      %218 = vsyncadd [#allocation5], %s217
      %s220 = sshll.u32 [#allocation4], 4
      %s221 = int_to_ptr.vmem [resolvable:$true] %s220
      %223 = dma.vmem_to_hbm [thread:$0]  %s221, 128, %s3, [#allocation5]
    $region25: #{tpu_custom_call.1} parent=1 // pred_fallthru
      _
    // Predicated region
    $region26: #{tpu_custom_call.1} parent=1 // pred_check
      _
    $region27: #{tpu_custom_call.1} parent=1 // pred_check_branch
      %225 = sbr.rel (0) target = $region29
    $region28: #{tpu_custom_call.1} parent=1 // pred_region
      %s227 = ssub.s32 128, 128
      %228 = vsyncadd [#allocation7], %s227
      %s230 = sshll.u32 [#allocation6], 4
      %s231 = int_to_ptr.vmem [resolvable:$true] %s230
      %233 = dma.vmem_to_hbm [thread:$0]  %s231, 128, %s4, [#allocation7]
    $region29: #{tpu_custom_call.1} parent=1 // pred_fallthru
      _
    // Predicated region
    $region30: #{tpu_custom_call.1} parent=1 // pred_check
      _
    $region31: #{tpu_custom_call.1} parent=1 // pred_check_branch
      %235 = sbr.rel (0) target = $region33
    $region32: #{tpu_custom_call.1} parent=1 // pred_region
      %236 = dma.done [#allocation5], 128
    $region33: #{tpu_custom_call.1} parent=1 // pred_fallthru
      _
    // Predicated region
    $region34: #{tpu_custom_call.1} parent=1 // pred_check
      _
    $region35: #{tpu_custom_call.1} parent=1 // pred_check_branch
      %238 = sbr.rel (0) target = $region37
    $region36: #{tpu_custom_call.1} parent=1 // pred_region
      %239 = dma.done [#allocation7], 128
    $region37: #{tpu_custom_call.1} parent=1 // pred_fallthru
      _
    %240 = vsyncpa [#allocation5], 1
    %241 = vsyncpa [#allocation7], 1

</llo_original>
